<compile_context>
chip_gen: v6e
topology: v6e:2x2x1
jax: 0.10.0
libtpu: 0.0.40
codegen_flags: <defaults>
</compile_context>

<pallas_src>
import functools

import jax
import jax.numpy as jnp
from jax.experimental import pallas as pl
from jax.experimental.pallas import tpu as pltpu

LANES = 128
MAX_BLOCK_ROWS = 4096            # review: 2048-4096; 4096 x 128 x f32 = 2 MiB/block
MAX_LANE_DIM = 4096              # widest lane dim we accept for the copy-free view
TARGET_BLOCK_BYTES = 2 * 1024 * 1024  # per input per buffer; 2 inputs x 2 bufs = 8 MiB


def _round_up(v, m):
    return -(-v // m) * m


def _free_2d_view(a):
    """2-D view of `a` using copy-free (row-major) reshapes only.

    Preference order:
      1. (n // 128, 128) when the flat size divides 128 (lane-dense, no copy).
      2. (n // c, c) where c is the largest trailing-dim product <= MAX_LANE_DIM
         (still no copy; lanes are ~97% utilized for e.g. c = 250).
      3. Rare fallback (ragged 1-D input etc.): tiny zero pad to a lane multiple.
    """
    n = a.size
    if n % LANES == 0:
        return a.reshape(n // LANES, LANES), False
    c_best = 0
    c = 1
    for d in reversed(a.shape):
        c *= int(d)
        if c > MAX_LANE_DIM:
            break
        c_best = c
    if c_best > 1 and n % c_best == 0:
        return a.reshape(n // c_best, c_best), False
    # TODO(synk): this rare path still pays an O(n) pad copy (ragged 1-D inputs).
    pad = (-n) % LANES
    flat = jnp.pad(a.reshape(-1), (0, pad))
    return flat.reshape(-1, LANES), True


def _mixed_loss_kernel(x_ref, t_ref, out_ref, acc_ref, *,
                       alpha, gamma, total_n,
                       tail_full_rows, tail_rem, needs_mask,
                       binary_targets, int_gamma):
    i = pl.program_id(0)
    last = pl.num_programs(0) - 1
    block_shape = x_ref.shape  # (block_rows, lane_dim)

    @pl.when(i == 0)
    def _init():
        acc_ref[...] = jnp.zeros_like(acc_ref)

    def compute_and_accumulate(mask):
        x = x_ref[...].astype(jnp.float32)
        t = t_ref[...].astype(jnp.float32)
        if mask is not None:
            # Zero BEFORE the transcendental chain: out-of-bounds rows may hold
            # arbitrary bits (NaN/Inf) and NaN * 0 would poison the accumulators.
            x = jnp.where(mask, x, 0.0)
            t = jnp.where(mask, t, 0.0)

        # --- shared transcendentals -----------------------------------------
        ax = jnp.abs(x)
        e = jnp.exp(-ax)                        # exp(-|x|), shared by BCE & sigmoid
        log1pe = jnp.log1p(e)                   # == log(exp(-max_val)+exp(-x-max_val))
        relu_nx = jnp.maximum(-x, 0.0)          # (-input).clamp(min=0)

        # Stable BCE-with-logits (identical to the PyTorch formula).
        bce = x - x * t + relu_nx + log1pe

        # sigmoid(x) without a second exp.
        p = jnp.where(x >= 0.0, 1.0, e) / (1.0 + e)

        # --- focal modulator exp(gamma * logsigmoid(-x*(2t-1))) --------------
        if binary_targets and int_gamma is not None:
            # sigmoid(-x*(2t-1)) == p + t*(1-2p) for t in {0,1}; integer gamma
            # becomes repeated multiplies -> no transcendental at all.
            s = p + t * (1.0 - 2.0 * p)
            if int_gamma == 0:
                mod = jnp.ones_like(s)
            else:
                mod = s
                for _ in range(int_gamma - 1):
                    mod = mod * s
        elif binary_targets:
            # |z| == |x| for binary targets -> reuse log1pe; one exp remains.
            relu_x = jnp.maximum(x, 0.0)
            invprobs = -(jnp.where(t >= 0.5, relu_x, relu_nx) + log1pe)
            mod = jnp.exp(invprobs * gamma)
        else:
            # Fully general (soft targets / fractional gamma) path.
            z = x * (1.0 - 2.0 * t)
            invprobs = -(jnp.maximum(-z, 0.0) + jnp.log1p(jnp.exp(-jnp.abs(z))))
            mod = jnp.exp(invprobs * gamma)

        focal = mod * bce
        pt = p * t                              # masked rows: t == 0 -> pt == 0
        p_plus_t = p + t
        if mask is not None:
            # Constants from the zeroed rows (focal(0,0), p=0.5) must not leak in.
            focal = jnp.where(mask, focal, 0.0)
            p_plus_t = jnp.where(mask, p_plus_t, 0.0)

        # Fold each (block_rows, C) plane to (1, C) with a row sum (pure per-lane
        # adds + one sublane reduce) and add into the resident VMEM accumulator.
        acc_ref[0] = acc_ref[0] + jnp.sum(focal, axis=0, keepdims=True)
        acc_ref[1] = acc_ref[1] + jnp.sum(pt, axis=0, keepdims=True)
        acc_ref[2] = acc_ref[2] + jnp.sum(p_plus_t, axis=0, keepdims=True)

    if needs_mask:
        @pl.when(i != last)
        def _full_block():
            compute_and_accumulate(None)

        @pl.when(i == last)
        def _tail_block():
            row = jax.lax.broadcasted_iota(jnp.int32, block_shape, 0)
            mask = row < tail_full_rows
            if tail_rem:  # only the rare padded-1-D fallback has a ragged lane tail
                lane = jax.lax.broadcasted_iota(jnp.int32, block_shape, 1)
                mask = mask | ((row == tail_full_rows) & (lane < tail_rem))
            compute_and_accumulate(mask)
    else:
        compute_and_accumulate(None)

    @pl.when(i == last)
    def _finalize():
        focal_sum = jnp.sum(acc_ref[0])
        inter = jnp.sum(acc_ref[1])
        sum_p_plus_t = jnp.sum(acc_ref[2])
        focal_mean = focal_sum / float(total_n)
        dice = (2.0 * inter + 1.0) / (sum_p_plus_t + 1.0)   # smooth = 1.0
        loss = alpha * focal_mean - jnp.log(dice)
        out_ref[...] = jnp.full((1, 1), loss, jnp.float32)


def mixed_loss(inputs, targets, alpha=10.0, gamma=2.0, *,
               binary_targets=True, block_rows_cap=None):
    """Pallas implementation of MixedLoss.forward (inputs are pre-sigmoid logits).

    `binary_targets=True` (the module's actual dice-loss contract) enables the
    cheap focal path; pass False for soft targets.  `block_rows_cap` exists only
    to force a multi-block grid in tests.
    """
    if inputs.shape != targets.shape:
        raise ValueError(
            f"Target size ({targets.shape}) must be the same as input size ({inputs.shape})")
    if targets.dtype == jnp.bool_:
        targets = targets.astype(jnp.int8)     # Pallas inputs should not be i1

    n = int(inputs.size)
    x2, padded_x = _free_2d_view(inputs)
    t2, _ = _free_2d_view(targets)
    R, C = x2.shape
    c_pad = _round_up(C, LANES)

    # Block-row budget: ~2 MiB per input per buffer, multiple of 32 sublanes
    # (covers f32/bf16/int8 tilings); a single exact full-height block if it fits.
    rows_fit = max(32, (TARGET_BLOCK_BYTES // (c_pad * 4)) // 32 * 32)
    rows_fit = min(rows_fit, MAX_BLOCK_ROWS)
    if block_rows_cap is not None:
        rows_fit = max(32, min(rows_fit, (int(block_rows_cap) // 32) * 32))
    block_rows = R if R <= rows_fit else rows_fit

    nsteps = -(-R // block_rows)
    base = (nsteps - 1) * block_rows
    if padded_x:
        tail_full_rows = n // LANES - base     # last row of the view is partial
        tail_rem = n % LANES
    else:
        tail_full_rows = R - base              # view covers exactly n elements
        tail_rem = 0
    needs_mask = (tail_full_rows != block_rows) or (tail_rem != 0)

    g = float(gamma)
    int_gamma = int(g) if (binary_targets and g.is_integer() and 0 <= g <= 8) else None

    kernel = functools.partial(
        _mixed_loss_kernel,
        alpha=float(alpha), gamma=g, total_n=n,
        tail_full_rows=int(tail_full_rows), tail_rem=int(tail_rem),
        needs_mask=bool(needs_mask),
        binary_targets=bool(binary_targets), int_gamma=int_gamma,
    )

    trans_per_elem = 3 if int_gamma is not None else (4 if binary_targets else 6)
    cost = pl.CostEstimate(
        flops=30 * n,
        transcendentals=trans_per_elem * n,
        bytes_accessed=x2.size * x2.dtype.itemsize + t2.size * t2.dtype.itemsize + 4)

    out = pl.pallas_call(
        kernel,
        out_shape=jax.ShapeDtypeStruct((1, 1), jnp.float32),
        grid_spec=pltpu.PrefetchScalarGridSpec(
            num_scalar_prefetch=0,
            grid=(nsteps,),
            in_specs=[
                pl.BlockSpec((block_rows, C), lambda i: (i, 0)),
                pl.BlockSpec((block_rows, C), lambda i: (i, 0)),
            ],
            out_specs=pl.BlockSpec((1, 1), lambda i: (0, 0)),
            scratch_shapes=[pltpu.VMEM((3, 1, C), jnp.float32)],
        ),
        compiler_params=pltpu.CompilerParams(
            dimension_semantics=("arbitrary",),   # sequential reduction axis
        ),
        cost_estimate=cost,
    )(x2, t2)
    return out[0, 0]


def _reference_mixed_loss(inputs, targets, alpha=10.0, gamma=2.0):
    x = inputs.reshape(-1).astype(jnp.float32)
    t = targets.reshape(-1).astype(jnp.float32)
    max_val = jnp.maximum(-x, 0.0)
    bce = x - x * t + max_val + jnp.log(jnp.exp(-max_val) + jnp.exp(-x - max_val))
    invprobs = jax.nn.log_sigmoid(-x * (t * 2.0 - 1.0))
    focal = jnp.mean(jnp.exp(invprobs * gamma) * bce)
    p = jax.nn.sigmoid(x)
    dice = (2.0 * jnp.sum(p * t) + 1.0) / (jnp.sum(p) + jnp.sum(t) + 1.0)
    return alpha * focal - jnp.log(dice)


if __name__ == "__main__":
    key = jax.random.PRNGKey(0)
    alpha, gamma = 10.0, 2.0
    k1, k2, k3, k4, k5, k6, k7, k8 = jax.random.split(key, 8)

    # 1) NCHW logits + binary targets; flat size is a multiple of 128 (lane-dense view).
    x1 = jax.random.normal(k1, (2, 4, 16, 16), dtype=jnp.float32)
    t1 = jax.random.bernoulli(k2, 0.5, (2, 4, 16, 16)).astype(jnp.float32)
    out1 = jax.block_until_ready(mixed_loss(x1, t1, alpha, gamma))
    ref1 = _reference_mixed_loss(x1, t1, alpha, gamma)
    assert jnp.allclose(out1, ref1, rtol=1e-4, atol=1e-4), (out1, ref1)

    # 2) Flat size NOT a multiple of 128: copy-free (1500, 250) view, no jnp.pad.
    x2 = jax.random.normal(k3, (3, 2, 250, 250), dtype=jnp.float32)
    t2 = jax.random.bernoulli(k4, 0.5, (3, 2, 250, 250)).astype(jnp.float32)
    out2 = jax.block_until_ready(mixed_loss(x2, t2, alpha, gamma))
    ref2 = _reference_mixed_loss(x2, t2, alpha, gamma)
    assert jnp.allclose(out2, ref2, rtol=1e-4, atol=1e-4), (out2, ref2)

    # 3) Same data, forced multi-block grid with a ragged (garbage-read) tail block.
    out3 = jax.block_until_ready(mixed_loss(x2, t2, alpha, gamma, block_rows_cap=256))
    assert jnp.allclose(out3, ref2, rtol=1e-4, atol=1e-4), (out3, ref2)

    # 4) bf16 logits / bf16 {0,1} targets pass straight through (cast in-kernel).
    x4 = jax.random.normal(k5, (2, 1, 32, 32), dtype=jnp.float32).astype(jnp.bfloat16)
    t4 = jax.random.bernoulli(k6, 0.5, (2, 1, 32, 32)).astype(jnp.bfloat16)
    out4 = jax.block_until_ready(mixed_loss(x4, t4, alpha, gamma))
    ref4 = _reference_mixed_loss(x4, t4, alpha, gamma)
    assert jnp.allclose(out4, ref4, rtol=1e-4, atol=1e-4), (out4, ref4)

    # 5) Soft (non-binary) targets + fractional gamma -> general logsigmoid path.
    x5 = jax.random.normal(k7, (4, 8, 16, 16), dtype=jnp.float32)
    t5 = jax.random.uniform(k8, (4, 8, 16, 16), dtype=jnp.float32)
    out5 = jax.block_until_ready(mixed_loss(x5, t5, alpha, 1.5, binary_targets=False))
    ref5 = _reference_mixed_loss(x5, t5, alpha, 1.5)
    assert jnp.allclose(out5, ref5, rtol=1e-4, atol=1e-4), (out5, ref5)

    print("KERNEL_OK")
</pallas_src>

<mosaic_0001>
module attributes {stable_mosaic.version = 11 : i64} {
  func.func @_mixed_loss_kernel(%arg0: i32, %arg1: memref<16x128xf32, #tpu.memory_space<vmem>>, %arg2: memref<16x128xf32, #tpu.memory_space<vmem>>, %arg3: memref<1x1xf32, #tpu.memory_space<vmem>>, %arg4: memref<3x1x128xf32, #tpu.memory_space<vmem>>) attributes {dimension_semantics = [#tpu.dimension_semantics<arbitrary>], iteration_bounds = array<i64: 1>, scalar_prefetch = 0 : i64, scratch_operands = 1 : i64, tpu.core_type = #tpu.core_type<tc>, window_params = [{transform_indices = @transform_0, window_bounds = array<i64: 16, 128>}, {transform_indices = @transform_1, window_bounds = array<i64: 16, 128>}, {pipeline_mode = #tpu.pipeline_mode<synchronous>, transform_indices = @transform_2, window_bounds = array<i64: 1, 1>}]} {
    %c0_i32 = arith.constant 0 : i32
    %0 = arith.cmpi eq, %arg0, %c0_i32 : i32
    %1 = arith.extui %0 : i1 to i32
    %c0_i32_0 = arith.constant 0 : i32
    %2 = arith.cmpi ne, %1, %c0_i32_0 : i32
    scf.if %2 {
      %cst_32 = arith.constant 0.000000e+00 : f32
      %62 = vector.broadcast %cst_32 : f32 to vector<3x1x128xf32>
      %c0_33 = arith.constant 0 : index
      %c0_34 = arith.constant 0 : index
      %c0_35 = arith.constant 0 : index
      %63 = vector.load %arg4[%c0_33, %c0_34, %c0_35] : memref<3x1x128xf32, #tpu.memory_space<vmem>>, vector<3x1x128xf32>
      tpu.vector_store %arg4[%c0_33, %c0_34, %c0_35], %62 {strides = array<i32>} : memref<3x1x128xf32, #tpu.memory_space<vmem>>, vector<3x1x128xf32>,
    } else {
    }
    %c0 = arith.constant 0 : index
    %c0_1 = arith.constant 0 : index
    %3 = vector.load %arg1[%c0, %c0_1] : memref<16x128xf32, #tpu.memory_space<vmem>>, vector<16x128xf32>
    %c0_2 = arith.constant 0 : index
    %c0_3 = arith.constant 0 : index
    %4 = vector.load %arg2[%c0_2, %c0_3] : memref<16x128xf32, #tpu.memory_space<vmem>>, vector<16x128xf32>
    %5 = math.absf %3 : vector<16x128xf32>
    %cst = arith.constant 0.000000e+00 : f32
    %6 = vector.broadcast %cst : f32 to vector<16x128xf32>
    %7 = arith.subf %6, %5 : vector<16x128xf32>
    %8 = math.exp %7 : vector<16x128xf32>
    %9 = math.log1p %8 : vector<16x128xf32>
    %cst_4 = arith.constant 0.000000e+00 : f32
    %10 = vector.broadcast %cst_4 : f32 to vector<16x128xf32>
    %11 = arith.subf %10, %3 : vector<16x128xf32>
    %cst_5 = arith.constant 0.000000e+00 : f32
    %12 = vector.broadcast %cst_5 : f32 to vector<16x128xf32>
    %13 = arith.maximumf %11, %12 : vector<16x128xf32>
    %14 = arith.mulf %3, %4 : vector<16x128xf32>
    %15 = arith.subf %3, %14 : vector<16x128xf32>
    %16 = arith.addf %15, %13 : vector<16x128xf32>
    %17 = arith.addf %16, %9 : vector<16x128xf32>
    %cst_6 = arith.constant 0.000000e+00 : f32
    %18 = vector.broadcast %cst_6 : f32 to vector<16x128xf32>
    %19 = arith.cmpf oge, %3, %18 : vector<16x128xf32>
    %cst_7 = arith.constant 1.000000e+00 : f32
    %20 = vector.broadcast %cst_7 : f32 to vector<16x128xf32>
    %21 = arith.select %19, %20, %8 : vector<16x128xi1>, vector<16x128xf32>
    %cst_8 = arith.constant 1.000000e+00 : f32
    %22 = vector.broadcast %cst_8 : f32 to vector<16x128xf32>
    %23 = arith.addf %22, %8 : vector<16x128xf32>
    %24 = arith.divf %21, %23 : vector<16x128xf32>
    %cst_9 = arith.constant 2.000000e+00 : f32
    %25 = vector.broadcast %cst_9 : f32 to vector<16x128xf32>
    %26 = arith.mulf %25, %24 : vector<16x128xf32>
    %cst_10 = arith.constant 1.000000e+00 : f32
    %27 = vector.broadcast %cst_10 : f32 to vector<16x128xf32>
    %28 = arith.subf %27, %26 : vector<16x128xf32>
    %29 = arith.mulf %4, %28 : vector<16x128xf32>
    %30 = arith.addf %24, %29 : vector<16x128xf32>
    %31 = arith.mulf %30, %30 : vector<16x128xf32>
    %32 = arith.mulf %31, %17 : vector<16x128xf32>
    %33 = arith.mulf %24, %4 : vector<16x128xf32>
    %34 = arith.addf %24, %4 : vector<16x128xf32>
    %c0_11 = arith.constant 0 : index
    %c0_12 = arith.constant 0 : index
    %c0_13 = arith.constant 0 : index
    %35 = vector.load %arg4[%c0_11, %c0_12, %c0_13] : memref<3x1x128xf32, #tpu.memory_space<vmem>>, vector<1x1x128xf32>
    %36 = vector.shape_cast %35 : vector<1x1x128xf32> to vector<1x128xf32>
    %cst_14 = arith.constant dense<0.000000e+00> : vector<128xf32>
    %37 = vector.multi_reduction <add>, %32, %cst_14 [0] : vector<16x128xf32> to vector<128xf32>
    %38 = vector.shape_cast %37 : vector<128xf32> to vector<1x128xf32>
    %39 = arith.addf %36, %38 : vector<1x128xf32>
    %c0_15 = arith.constant 0 : index
    %c0_16 = arith.constant 0 : index
    %c0_17 = arith.constant 0 : index
    %40 = vector.load %arg4[%c0_15, %c0_16, %c0_17] : memref<3x1x128xf32, #tpu.memory_space<vmem>>, vector<1x1x128xf32>
    %41 = vector.shape_cast %40 : vector<1x1x128xf32> to vector<1x128xf32>
    %42 = vector.shape_cast %39 : vector<1x128xf32> to vector<1x1x128xf32>
    tpu.vector_store %arg4[%c0_15, %c0_16, %c0_17], %42 {strides = array<i32>} : memref<3x1x128xf32, #tpu.memory_space<vmem>>, vector<1x1x128xf32>,
    %c1 = arith.constant 1 : index
    %c0_18 = arith.constant 0 : index
    %c0_19 = arith.constant 0 : index
    %43 = vector.load %arg4[%c1, %c0_18, %c0_19] : memref<3x1x128xf32, #tpu.memory_space<vmem>>, vector<1x1x128xf32>
    %44 = vector.shape_cast %43 : vector<1x1x128xf32> to vector<1x128xf32>
    %cst_20 = arith.constant dense<0.000000e+00> : vector<128xf32>
    %45 = vector.multi_reduction <add>, %33, %cst_20 [0] : vector<16x128xf32> to vector<128xf32>
    %46 = vector.shape_cast %45 : vector<128xf32> to vector<1x128xf32>
    %47 = arith.addf %44, %46 : vector<1x128xf32>
    %c1_21 = arith.constant 1 : index
    %c0_22 = arith.constant 0 : index
    %c0_23 = arith.constant 0 : index
    %48 = vector.load %arg4[%c1_21, %c0_22, %c0_23] : memref<3x1x128xf32, #tpu.memory_space<vmem>>, vector<1x1x128xf32>
    %49 = vector.shape_cast %48 : vector<1x1x128xf32> to vector<1x128xf32>
    %50 = vector.shape_cast %47 : vector<1x128xf32> to vector<1x1x128xf32>
    tpu.vector_store %arg4[%c1_21, %c0_22, %c0_23], %50 {strides = array<i32>} : memref<3x1x128xf32, #tpu.memory_space<vmem>>, vector<1x1x128xf32>,
    %c2 = arith.constant 2 : index
    %c0_24 = arith.constant 0 : index
    %c0_25 = arith.constant 0 : index
    %51 = vector.load %arg4[%c2, %c0_24, %c0_25] : memref<3x1x128xf32, #tpu.memory_space<vmem>>, vector<1x1x128xf32>
    %52 = vector.shape_cast %51 : vector<1x1x128xf32> to vector<1x128xf32>
    %cst_26 = arith.constant dense<0.000000e+00> : vector<128xf32>
    %53 = vector.multi_reduction <add>, %34, %cst_26 [0] : vector<16x128xf32> to vector<128xf32>
    %54 = vector.shape_cast %53 : vector<128xf32> to vector<1x128xf32>
    %55 = arith.addf %52, %54 : vector<1x128xf32>
    %c2_27 = arith.constant 2 : index
    %c0_28 = arith.constant 0 : index
    %c0_29 = arith.constant 0 : index
    %56 = vector.load %arg4[%c2_27, %c0_28, %c0_29] : memref<3x1x128xf32, #tpu.memory_space<vmem>>, vector<1x1x128xf32>
    %57 = vector.shape_cast %56 : vector<1x1x128xf32> to vector<1x128xf32>
    %58 = vector.shape_cast %55 : vector<1x128xf32> to vector<1x1x128xf32>
    tpu.vector_store %arg4[%c2_27, %c0_28, %c0_29], %58 {strides = array<i32>} : memref<3x1x128xf32, #tpu.memory_space<vmem>>, vector<1x1x128xf32>,
    %c0_i32_30 = arith.constant 0 : i32
    %59 = arith.cmpi eq, %arg0, %c0_i32_30 : i32
    %60 = arith.extui %59 : i1 to i32
    %c0_i32_31 = arith.constant 0 : i32
    %61 = arith.cmpi ne, %60, %c0_i32_31 : i32
    scf.if %61 {
      %c0_32 = arith.constant 0 : index
      %c0_33 = arith.constant 0 : index
      %c0_34 = arith.constant 0 : index
      %62 = vector.load %arg4[%c0_32, %c0_33, %c0_34] : memref<3x1x128xf32, #tpu.memory_space<vmem>>, vector<1x1x128xf32>
      %63 = vector.shape_cast %62 : vector<1x1x128xf32> to vector<1x128xf32>
      %64 = vector.shape_cast %63 : vector<1x128xf32> to vector<1x1x128xf32>
      %cst_35 = arith.constant dense<0.000000e+00> : vector<1xf32>
      %65 = vector.multi_reduction <add>, %64, %cst_35 [1, 2] : vector<1x1x128xf32> to vector<1xf32>
      %66 = vector.shape_cast %65 : vector<1xf32> to vector<1x1x1xf32>
      %67 = vector.extract %66[0, 0, 0] : f32 from vector<1x1x1xf32>
      %c1_36 = arith.constant 1 : index
      %c0_37 = arith.constant 0 : index
      %c0_38 = arith.constant 0 : index
      %68 = vector.load %arg4[%c1_36, %c0_37, %c0_38] : memref<3x1x128xf32, #tpu.memory_space<vmem>>, vector<1x1x128xf32>
      %69 = vector.shape_cast %68 : vector<1x1x128xf32> to vector<1x128xf32>
      %70 = vector.shape_cast %69 : vector<1x128xf32> to vector<1x1x128xf32>
      %cst_39 = arith.constant dense<0.000000e+00> : vector<1xf32>
      %71 = vector.multi_reduction <add>, %70, %cst_39 [1, 2] : vector<1x1x128xf32> to vector<1xf32>
      %72 = vector.shape_cast %71 : vector<1xf32> to vector<1x1x1xf32>
      %73 = vector.extract %72[0, 0, 0] : f32 from vector<1x1x1xf32>
      %c2_40 = arith.constant 2 : index
      %c0_41 = arith.constant 0 : index
      %c0_42 = arith.constant 0 : index
      %74 = vector.load %arg4[%c2_40, %c0_41, %c0_42] : memref<3x1x128xf32, #tpu.memory_space<vmem>>, vector<1x1x128xf32>
      %75 = vector.shape_cast %74 : vector<1x1x128xf32> to vector<1x128xf32>
      %76 = vector.shape_cast %75 : vector<1x128xf32> to vector<1x1x128xf32>
      %cst_43 = arith.constant dense<0.000000e+00> : vector<1xf32>
      %77 = vector.multi_reduction <add>, %76, %cst_43 [1, 2] : vector<1x1x128xf32> to vector<1xf32>
      %78 = vector.shape_cast %77 : vector<1xf32> to vector<1x1x1xf32>
      %79 = vector.extract %78[0, 0, 0] : f32 from vector<1x1x1xf32>
      %cst_44 = arith.constant 2.048000e+03 : f32
      %80 = arith.divf %67, %cst_44 : f32
      %cst_45 = arith.constant 2.000000e+00 : f32
      %81 = arith.mulf %cst_45, %73 : f32
      %cst_46 = arith.constant 1.000000e+00 : f32
      %82 = arith.addf %81, %cst_46 : f32
      %cst_47 = arith.constant 1.000000e+00 : f32
      %83 = arith.addf %79, %cst_47 : f32
      %84 = arith.divf %82, %83 : f32
      %cst_48 = arith.constant 1.000000e+01 : f32
      %85 = arith.mulf %cst_48, %80 : f32
      %86 = math.log %84 : f32
      %87 = arith.subf %85, %86 : f32
      %88 = vector.broadcast %87 : f32 to vector<1x1xf32>
      %c0_49 = arith.constant 0 : index
      %c0_50 = arith.constant 0 : index
      %89 = vector.load %arg3[%c0_49, %c0_50] : memref<1x1xf32, #tpu.memory_space<vmem>>, vector<1x1xf32>
      tpu.vector_store %arg3[%c0_49, %c0_50], %88 {strides = array<i32>} : memref<1x1xf32, #tpu.memory_space<vmem>>, vector<1x1xf32>,
    } else {
    }
    return
  }
  func.func @transform_0(%arg0: i32) -> (i32, i32) {
    %c0_i32 = arith.constant 0 : i32
    %c0_i32_0 = arith.constant 0 : i32
    return %arg0, %c0_i32 : i32, i32
  }
  func.func @transform_1(%arg0: i32) -> (i32, i32) {
    %c0_i32 = arith.constant 0 : i32
    %c0_i32_0 = arith.constant 0 : i32
    return %arg0, %c0_i32 : i32, i32
  }
  func.func @transform_2(%arg0: i32) -> (i32, i32) {
    %c0_i32 = arith.constant 0 : i32
    %c0_i32_0 = arith.constant 0 : i32
    %c0_i32_1 = arith.constant 0 : i32
    return %c0_i32, %c0_i32_0 : i32, i32
  }
}

</mosaic_0001>

<llo_original>
// kernel: tpu_custom_call.1
$region0: #{tpu_custom_call.1}
  #allocation0 [shape = 'u32[]', space=smem, size = 0x4, offset = 0x4, fixed_abs, tag = 'smem constant byte address 0x4 - core index']
  #allocation1 [shape = 'u32[144,128]{1,0:T(1,128)}', space=vmem, size = 0x12000, scoped, tag = 'internal scratch']
  #allocation2 [shape = 'f32[3,1,128]{2,1,0:T(1,128)}', space=vmem, size = 0x600, scoped, tag = 'scratch operand']
  %s0 = inlined_call_operand.hbm [shape: f32[16,128], index: 0, kind: input, shape index: {}]
  %s1 = inlined_call_operand.hbm [shape: f32[16,128], index: 1, kind: input, shape index: {}]
  %s2 = inlined_call_operand.hbm [shape: f32[1,1], index: 2, kind: output, shape index: {}]
  %s3 = sld [smem:[#allocation0]]
  $region34: #{tpu_custom_call.1} parent=0
    _
  %s5 = ssub.s32 1, %s3
  %s6 = scalar_select 0, %s5, %s3
  $region1: #{tpu_custom_call.1} parent=0
    #allocation3 [shape = 'u8[8192]{0}', space=vmem, size = 0x2000, scoped, tag = 'input window, operand 0, single buffered']
    #allocation4 [shape = 's32[1]{0}', space=sflag, size = 0x4, scoped, tag = 'scoped memory for tpu_custom_call.1']
    #allocation5 [shape = 's32[1]{0}', space=sflag, size = 0x4, scoped, tag = 'scoped memory for tpu_custom_call.1']
    #allocation6 [shape = 'u8[8192]{0}', space=vmem, size = 0x2000, scoped, tag = 'input window, operand 1, single buffered']
    #allocation7 [shape = 's32[1]{0}', space=sflag, size = 0x4, scoped, tag = 'scoped memory for tpu_custom_call.1']
    #allocation8 [shape = 'u8[512]{0}', space=vmem, size = 0x400, scoped, tag = 'output window, operand 0, single buffered']
    %7 = vsyncpa [#allocation4], 0
    %8 = vsyncpa [#allocation7], 0
    %9 = vsyncpa [#allocation5], 0
    // Predicated region
    $region2: #{tpu_custom_call.1} parent=1 // pred_check
      _
    $region3: #{tpu_custom_call.1} parent=1 // pred_check_branch
      %11 = sbr.rel (0) target = $region5
    $region4: #{tpu_custom_call.1} parent=1 // pred_region
      %s13 = ssub.s32 256, 256
      %14 = vsyncadd [#allocation4], %s13
      %s15 = sshll.u32 [#allocation3], 4
      %s16 = int_to_ptr.vmem [resolvable:$true] %s15
      %21 = dma.hbm_to_vmem [thread:$0]  %s0, 256, %s16, [#allocation4], 128, 128, 8
    $region5: #{tpu_custom_call.1} parent=1 // pred_fallthru
      _
    // Predicated region
    $region6: #{tpu_custom_call.1} parent=1 // pred_check
      _
    $region7: #{tpu_custom_call.1} parent=1 // pred_check_branch
      %23 = sbr.rel (0) target = $region9
    $region8: #{tpu_custom_call.1} parent=1 // pred_region
      %s25 = ssub.s32 256, 256
      %26 = vsyncadd [#allocation7], %s25
      %s27 = sshll.u32 [#allocation6], 4
      %s28 = int_to_ptr.vmem [resolvable:$true] %s27
      %33 = dma.hbm_to_vmem [thread:$0]  %s1, 256, %s28, [#allocation7], 128, 128, 8
    $region9: #{tpu_custom_call.1} parent=1 // pred_fallthru
      _
    // Predicated region
    $region10: #{tpu_custom_call.1} parent=1 // pred_check
      _
    $region11: #{tpu_custom_call.1} parent=1 // pred_check_branch
      %35 = sbr.rel (0) target = $region13
    $region12: #{tpu_custom_call.1} parent=1 // pred_region
      %36 = dma.done [#allocation4], 256
    $region13: #{tpu_custom_call.1} parent=1 // pred_fallthru
      _
    // Predicated region
    $region14: #{tpu_custom_call.1} parent=1 // pred_check
      _
    $region15: #{tpu_custom_call.1} parent=1 // pred_check_branch
      %38 = sbr.rel (0) target = $region17
    $region16: #{tpu_custom_call.1} parent=1 // pred_region
      %39 = dma.done [#allocation7], 256
    $region17: #{tpu_custom_call.1} parent=1 // pred_fallthru
      _
    %p40 = scmp.eq.s32.totalorder 0, 0
    // Predicated region
    $region18: #{tpu_custom_call.1} parent=1 // pred_check
      %p41 = pneg %p40
    $region19: #{tpu_custom_call.1} parent=1 // pred_check_branch
      %43 = sbr.rel (%p41) target = $region21
    $region20: #{tpu_custom_call.1} parent=1 // pred_region
      %44 = vst [vmem:[#allocation2] sm:$0x1] 0.0
      %45 = vst [vmem:[#allocation2 + $0x1] sm:$0x1] 0.0
      %46 = vst [vmem:[#allocation2 + $0x2] sm:$0x1] 0.0
    $region21: #{tpu_custom_call.1} parent=1 // pred_fallthru
      _
    %v47 = vld [vmem:[#allocation3] sm:$0xff]
    %v48 = vld [vmem:[#allocation3 + $0x8] sm:$0xff]
    %v49 = vld [vmem:[#allocation6] sm:$0xff]
    %v50 = vld [vmem:[#allocation6 + $0x8] sm:$0xff]
    %v51 = vand.u32 2147483647, %v47
    %v52 = vand.u32 2147483647, %v48
    %v53 = vsub.f32 0.0, %v51
    %v54 = vsub.f32 0.0, %v52
    %v55 = vmul.f32 %v53, 1.442695
    %v56 = vpow.pop %v55
    %v57 = vmul.f32 %v54, 1.442695
    %v58 = vpow.pop %v57
    %v59 = vadd.f32 %v56, 1.0
    %v60 = vlog2.pop %v59
    %v61 = vmul.f32 %v60, 0.6931472
    %v62 = vmul.f32 -0.5, %v56
    %v63 = vadd.f32 %v62, 1.0
    %v64 = vmul.f32 %v63, %v56
    %v65 = vand.u32 2147483647, %v56
    %vm66 = vcmp.lt.f32.partialorder %v65, 0.0004427343
    %v67 = vsel %vm66, %v64, %v61
    %v68 = vadd.f32 %v58, 1.0
    %v69 = vlog2.pop %v68
    %v70 = vmul.f32 %v69, 0.6931472
    %v71 = vmul.f32 -0.5, %v58
    %v72 = vadd.f32 %v71, 1.0
    %v73 = vmul.f32 %v72, %v58
    %v74 = vand.u32 2147483647, %v58
    %vm75 = vcmp.lt.f32.partialorder %v74, 0.0004427343
    %v76 = vsel %vm75, %v73, %v70
    %v77 = vsub.f32 0.0, %v47
    %v78 = vsub.f32 0.0, %v48
    %v79 = vmax.f32 %v77, 0.0
    %v80 = vmax.f32 %v78, 0.0
    %v81 = vmul.f32 %v47, %v49
    %v82 = vmul.f32 %v48, %v50
    %v83 = vsub.f32 %v47, %v81
    %v84 = vsub.f32 %v48, %v82
    %v85 = vadd.f32 %v83, %v79
    %v86 = vadd.f32 %v84, %v80
    %v87 = vadd.f32 %v85, %v67
    %v88 = vadd.f32 %v86, %v76
    %vm89 = vcmp.ge.f32.partialorder %v47, 0.0
    %vm90 = vcmp.ge.f32.partialorder %v48, 0.0
    %v91 = vsel %vm89, 1.0, %v56
    %v92 = vsel %vm90, 1.0, %v58
    %v93 = vadd.f32 %v56, 1.0
    %v94 = vadd.f32 %v58, 1.0
    %v95 = vrcp.pop %v93
    %v96 = vmul.f32 %v91, %v95
    %v97 = vrcp.pop %v94
    %v98 = vmul.f32 %v92, %v97
    %v99 = vmul.f32 %v96, 2.0
    %v100 = vmul.f32 %v98, 2.0
    %v101 = vsub.f32 1.0, %v99
    %v102 = vsub.f32 1.0, %v100
    %v103 = vmul.f32 %v49, %v101
    %v104 = vmul.f32 %v50, %v102
    %v105 = vadd.f32 %v96, %v103
    %v106 = vadd.f32 %v98, %v104
    %v107 = vmul.f32 %v105, %v105
    %v108 = vmul.f32 %v106, %v106
    %v109 = vmul.f32 %v107, %v87
    %v110 = vmul.f32 %v108, %v88
    %v111 = vmul.f32 %v96, %v49
    %v112 = vmul.f32 %v98, %v50
    %v113 = vadd.f32 %v96, %v49
    %v114 = vadd.f32 %v98, %v50
    %v115 = vld [vmem:[#allocation2] sm:$0x1]
    %v116 = vadd.f32 %v109, %v110
    %v117 = vrot.slane %v116, 4
    %v118 = vadd.f32 %v116, %v117
    %v119 = vrot.slane %v118, 2
    %v120 = vadd.f32 %v118, %v119
    %v121 = vrot.slane %v120, 1
    %v122 = vadd.f32 %v120, %v121
    %v123 = vadd.f32 %v115, %v122
    %124 = vst [vmem:[#allocation2] sm:$0x1] %v123
    %s125 = scalar_lea.vmem [#allocation2], 1
    %v126 = vld [vmem:[%s125] sm:$0x1]
    %v127 = vadd.f32 %v111, %v112
    %v128 = vrot.slane %v127, 4
    %v129 = vadd.f32 %v127, %v128
    %v130 = vrot.slane %v129, 2
    %v131 = vadd.f32 %v129, %v130
    %v132 = vrot.slane %v131, 1
    %v133 = vadd.f32 %v131, %v132
    %v134 = vadd.f32 %v126, %v133
    %135 = vst [vmem:[%s125] sm:$0x1] %v134
    %s136 = scalar_lea.vmem [#allocation2], 2
    %v137 = vld [vmem:[%s136] sm:$0x1]
    %v138 = vadd.f32 %v113, %v114
    %v139 = vrot.slane %v138, 4
    %v140 = vadd.f32 %v138, %v139
    %v141 = vrot.slane %v140, 2
    %v142 = vadd.f32 %v140, %v141
    %v143 = vrot.slane %v142, 1
    %v144 = vadd.f32 %v142, %v143
    %v145 = vadd.f32 %v137, %v144
    %146 = vst [vmem:[%s136] sm:$0x1] %v145
    // Predicated region
    $region22: #{tpu_custom_call.1} parent=1 // pred_check
      %p147 = pneg %p40
    $region23: #{tpu_custom_call.1} parent=1 // pred_check_branch
      %149 = sbr.rel (%p147) target = $region25
    $region24: #{tpu_custom_call.1} parent=1 // pred_region
      %v150 = vld [vmem:[#allocation2] sm:$0x1]
      %vm151 = vcmask 1040384
      %v152 = vsel %vm151, %v150, 0.0
      %153 = vadd.xlane.f32.xlu0 %v152
      %v154 = vpop.xlane.xlu0 %153
      %v155 = vrot.slane %v154, 4
      %v156 = vadd.f32 %v154, %v155
      %v157 = vrot.slane %v156, 2
      %v158 = vadd.f32 %v156, %v157
      %v159 = vrot.slane %v158, 1
      %v160 = vadd.f32 %v158, %v159
      %s161 = vtos %v160
      %v162 = vld [vmem:[%s125] sm:$0x1]
      %v163 = vsel %vm151, %v162, 0.0
      %164 = vadd.xlane.f32.xlu0 %v163
      %v165 = vpop.xlane.xlu0 %164
      %v166 = vrot.slane %v165, 4
      %v167 = vadd.f32 %v165, %v166
      %v168 = vrot.slane %v167, 2
      %v169 = vadd.f32 %v167, %v168
      %v170 = vrot.slane %v169, 1
      %v171 = vadd.f32 %v169, %v170
      %s172 = vtos %v171
      %v173 = vld [vmem:[%s136] sm:$0x1]
      %v174 = vsel %vm151, %v173, 0.0
      %175 = vadd.xlane.f32.xlu0 %v174
      %v176 = vpop.xlane.xlu0 %175
      %v177 = vrot.slane %v176, 4
      %v178 = vadd.f32 %v176, %v177
      %v179 = vrot.slane %v178, 2
      %v180 = vadd.f32 %v178, %v179
      %v181 = vrot.slane %v180, 1
      %v182 = vadd.f32 %v180, %v181
      %s183 = vtos %v182
      %v184 = vrcp.pop 2048.0
      %s185 = vtos %v184
      %s186 = smul.f32 %s161, %s185
      %s187 = smul.f32 %s172, 2.0
      %s188 = sadd.f32 %s187, 1.0
      %s189 = sadd.f32 %s183, 1.0
      %v190 = vstv %s189
      %v191 = vrcp.pop %v190
      %s192 = vtos %v191
      %s193 = smul.f32 %s188, %s192
      %s194 = smul.f32 %s186, 10.0
      %v195 = vstv %s193
      %v196 = vlog2.pop %v195
      %v197 = vmul.f32 %v196, 0.6931472
      %s198 = vtos %v197
      %s199 = ssub.f32 %s194, %s198
      %v200 = vstv %s199
      %vm201 = vcmask 0
      %202 = vst.msk [vmem:[#allocation8] sm:$0x1] %vm201, %v200
    $region25: #{tpu_custom_call.1} parent=1 // pred_fallthru
      _
    // Predicated region
    $region26: #{tpu_custom_call.1} parent=1 // pred_check
      _
    $region27: #{tpu_custom_call.1} parent=1 // pred_check_branch
      %204 = sbr.rel (0) target = $region29
    $region28: #{tpu_custom_call.1} parent=1 // pred_region
      %s206 = ssub.s32 16, 16
      %207 = vsyncadd [#allocation5], %s206
      %s209 = sshll.u32 [#allocation8], 4
      %s210 = int_to_ptr.vmem [resolvable:$true] %s209
      %212 = dma.vmem_to_hbm [thread:$0]  %s210, 16, %s2, [#allocation5]
    $region29: #{tpu_custom_call.1} parent=1 // pred_fallthru
      _
    // Predicated region
    $region30: #{tpu_custom_call.1} parent=1 // pred_check
      _
    $region31: #{tpu_custom_call.1} parent=1 // pred_check_branch
      %214 = sbr.rel (0) target = $region33
    $region32: #{tpu_custom_call.1} parent=1 // pred_region
      %215 = dma.done [#allocation5], 16
    $region33: #{tpu_custom_call.1} parent=1 // pred_fallthru
      _
    %216 = vsyncpa [#allocation4], 1
    %217 = vsyncpa [#allocation7], 1
    %218 = vsyncpa [#allocation5], 1

</llo_original>
